<compile_context>
chip_gen: v5e
topology: v5e:2x2
jax: 0.10.0
libtpu: 0.0.40
codegen_flags: <defaults>
</compile_context>

<pallas_src>
import jax
import jax.numpy as jnp
import numpy as np
from jax.experimental import pallas as pl
from jax.experimental.pallas import tpu as pltpu

_LANE = 128
_MAX_TILE_BYTES = 4 * 1024 * 1024   # per-tile cap; x4 (in+out, double-buffered) < 32 MiB


def _sublane(dtype):
    """Native sublane packing for a dtype: 8 (f32), 16 (bf16/f16), 32 (int8/fp8)."""
    return {4: 8, 2: 16, 1: 32}.get(jnp.dtype(dtype).itemsize, 8)


def _norm_kernel(scale_ref, bias_ref, img_ref, out_ref):
    # scale_ref / bias_ref: (1, c_blk, 1, 1) float32, broadcast over (sublane, lane).
    # img_ref / out_ref:    (1, c_blk, s_blk, 128) VMEM tile.
    x = img_ref[...].astype(jnp.float32)
    out_ref[...] = (x * scale_ref[...] + bias_ref[...]).astype(out_ref.dtype)


def _pick_tile(C, S, itemsize, sub):
    """Pick (c_blk, s_blk) with c_blk*s_blk*128*itemsize <= _MAX_TILE_BYTES and
    s_blk either the full S (always layout-legal) or a multiple of `sub`."""
    budget_rows = max(sub, _MAX_TILE_BYTES // (_LANE * itemsize))
    if S <= budget_rows:
        s_blk = S                                                    # full plane per block
        c_blk = max(1, min(C, _MAX_TILE_BYTES // max(1, S * _LANE * itemsize)))
    else:
        c_blk = 1
        s_blk = (budget_rows // sub) * sub
    return c_blk, s_blk


def normalization(img, mean, std, *, out_dtype=None):
    """(img - mean[:, None, None]) / std[:, None, None] for an NCHW image batch."""
    N, C, H, W = img.shape
    HW = H * W
    out_dtype = img.dtype if out_dtype is None else out_dtype

    # Fold mean/std into scale/bias in float32 (precision-safe for bf16/f16 inputs).
    mean_f = mean.astype(jnp.float32)
    std_f = std.astype(jnp.float32)
    scale = (1.0 / std_f).reshape(1, C, 1, 1)
    bias = (-mean_f / std_f).reshape(1, C, 1, 1)

    # Lane-dense layout: flatten H*W and pad to a multiple of 128 lanes.
    hw_pad = pl.cdiv(HW, _LANE) * _LANE
    x = img.reshape(N, C, HW)
    if hw_pad != HW:
        x = jnp.pad(x, ((0, 0), (0, 0), (0, hw_pad - HW)))
    S = hw_pad // _LANE
    x = x.reshape(N, C, S, _LANE)

    itemsize = jnp.dtype(img.dtype).itemsize
    sub = _sublane(img.dtype)
    c_blk, s_blk = _pick_tile(C, S, itemsize, sub)
    num_c = pl.cdiv(C, c_blk)
    num_s = pl.cdiv(S, s_blk)

    # v7x megacore: guarantee >= 2 grid steps so both TensorCores stream.
    if N * num_c * num_s < 2:
        half = ((s_blk // 2 + sub - 1) // sub) * sub
        if 0 < half < s_blk:
            s_blk = half
            num_s = pl.cdiv(S, s_blk)
        elif c_blk >= 2:
            c_blk = (c_blk + 1) // 2
            num_c = pl.cdiv(C, c_blk)

    out = pl.pallas_call(
        _norm_kernel,
        out_shape=jax.ShapeDtypeStruct((N, C, S, _LANE), out_dtype),
        grid=(N, num_c, num_s),
        in_specs=[
            pl.BlockSpec((1, c_blk, 1, 1), lambda n, c, s: (0, c, 0, 0)),        # scale
            pl.BlockSpec((1, c_blk, 1, 1), lambda n, c, s: (0, c, 0, 0)),        # bias
            pl.BlockSpec((1, c_blk, s_blk, _LANE), lambda n, c, s: (n, c, s, 0)),  # image slab
        ],
        out_specs=pl.BlockSpec((1, c_blk, s_blk, _LANE), lambda n, c, s: (n, c, s, 0)),
        compiler_params=pltpu.CompilerParams(
            dimension_semantics=("parallel", "parallel", "parallel"),
            vmem_limit_bytes=32 * 1024 * 1024,
        ),
    )(scale, bias, x)

    out = out.reshape(N, C, hw_pad)
    if hw_pad != HW:
        out = out[:, :, :HW]
    return out.reshape(N, C, H, W)


if __name__ == "__main__":
    # Hard-coded ImageNet stats from the module.
    mean = jnp.array([0.485, 0.456, 0.406], dtype=jnp.float32)
    std = jnp.array([0.229, 0.224, 0.225], dtype=jnp.float32)

    # Small example input consistent with the forward: N=2, C=3, H=W=16.
    key = jax.random.PRNGKey(0)
    img = jax.random.uniform(key, (2, 3, 16, 16), dtype=jnp.float32)

    out = jax.block_until_ready(normalization(img, mean, std))
    ref = (img - mean[None, :, None, None]) / std[None, :, None, None]
    np.testing.assert_allclose(np.asarray(out), np.asarray(ref), rtol=1e-5, atol=1e-6)

    # Odd spatial size: exercises the pad-to-lane-dense path (no lane-sparse blocks).
    img2 = jax.random.uniform(jax.random.PRNGKey(0), (2, 3, 5, 12), dtype=jnp.float32)
    out2 = jax.block_until_ready(normalization(img2, mean, std))
    ref2 = (img2 - mean[None, :, None, None]) / std[None, :, None, None]
    np.testing.assert_allclose(np.asarray(out2), np.asarray(ref2), rtol=1e-5, atol=1e-6)

    print("KERNEL_OK")
</pallas_src>

<mosaic_0001>
module attributes {stable_mosaic.version = 11 : i64} {
  func.func @_norm_kernel(%arg0: i32, %arg1: i32, %arg2: i32, %arg3: memref<1x3x1x1xf32, #tpu.memory_space<vmem>>, %arg4: memref<1x3x1x1xf32, #tpu.memory_space<vmem>>, %arg5: memref<1x3x2x128xf32, #tpu.memory_space<vmem>>, %arg6: memref<1x3x2x128xf32, #tpu.memory_space<vmem>>) attributes {dimension_semantics = [#tpu.dimension_semantics<parallel>, #tpu.dimension_semantics<parallel>, #tpu.dimension_semantics<parallel>], iteration_bounds = array<i64: 2, 1, 1>, scalar_prefetch = 0 : i64, scratch_operands = 0 : i64, tpu.core_type = #tpu.core_type<tc>, window_params = [{transform_indices = @transform_0, window_bounds = array<i64: 1, 3, 1, 1>}, {transform_indices = @transform_1, window_bounds = array<i64: 1, 3, 1, 1>}, {transform_indices = @transform_2, window_bounds = array<i64: 1, 3, 2, 128>}, {transform_indices = @transform_3, window_bounds = array<i64: 1, 3, 2, 128>}]} {
    %c0 = arith.constant 0 : index
    %c0_0 = arith.constant 0 : index
    %c0_1 = arith.constant 0 : index
    %c0_2 = arith.constant 0 : index
    %0 = vector.load %arg5[%c0, %c0_0, %c0_1, %c0_2] : memref<1x3x2x128xf32, #tpu.memory_space<vmem>>, vector<1x3x2x128xf32>
    %c0_3 = arith.constant 0 : index
    %c0_4 = arith.constant 0 : index
    %c0_5 = arith.constant 0 : index
    %c0_6 = arith.constant 0 : index
    %1 = vector.load %arg3[%c0_3, %c0_4, %c0_5, %c0_6] : memref<1x3x1x1xf32, #tpu.memory_space<vmem>>, vector<1x3x1x1xf32>
    %2 = vector.broadcast %1 : vector<1x3x1x1xf32> to vector<1x3x2x128xf32>
    %3 = arith.mulf %0, %2 : vector<1x3x2x128xf32>
    %c0_7 = arith.constant 0 : index
    %c0_8 = arith.constant 0 : index
    %c0_9 = arith.constant 0 : index
    %c0_10 = arith.constant 0 : index
    %4 = vector.load %arg4[%c0_7, %c0_8, %c0_9, %c0_10] : memref<1x3x1x1xf32, #tpu.memory_space<vmem>>, vector<1x3x1x1xf32>
    %5 = vector.broadcast %4 : vector<1x3x1x1xf32> to vector<1x3x2x128xf32>
    %6 = arith.addf %3, %5 : vector<1x3x2x128xf32>
    %c0_11 = arith.constant 0 : index
    %c0_12 = arith.constant 0 : index
    %c0_13 = arith.constant 0 : index
    %c0_14 = arith.constant 0 : index
    %7 = vector.load %arg6[%c0_11, %c0_12, %c0_13, %c0_14] : memref<1x3x2x128xf32, #tpu.memory_space<vmem>>, vector<1x3x2x128xf32>
    tpu.vector_store %arg6[%c0_11, %c0_12, %c0_13, %c0_14], %6 {strides = array<i32>} : memref<1x3x2x128xf32, #tpu.memory_space<vmem>>, vector<1x3x2x128xf32>,
    return
  }
  func.func @transform_0(%arg0: i32, %arg1: i32, %arg2: i32) -> (i32, i32, i32, i32) {
    %c0_i32 = arith.constant 0 : i32
    %c0_i32_0 = arith.constant 0 : i32
    %c0_i32_1 = arith.constant 0 : i32
    %c0_i32_2 = arith.constant 0 : i32
    return %c0_i32, %arg1, %c0_i32_0, %c0_i32_1 : i32, i32, i32, i32
  }
  func.func @transform_1(%arg0: i32, %arg1: i32, %arg2: i32) -> (i32, i32, i32, i32) {
    %c0_i32 = arith.constant 0 : i32
    %c0_i32_0 = arith.constant 0 : i32
    %c0_i32_1 = arith.constant 0 : i32
    %c0_i32_2 = arith.constant 0 : i32
    return %c0_i32, %arg1, %c0_i32_0, %c0_i32_1 : i32, i32, i32, i32
  }
  func.func @transform_2(%arg0: i32, %arg1: i32, %arg2: i32) -> (i32, i32, i32, i32) {
    %c0_i32 = arith.constant 0 : i32
    %c0_i32_0 = arith.constant 0 : i32
    return %arg0, %arg1, %arg2, %c0_i32 : i32, i32, i32, i32
  }
  func.func @transform_3(%arg0: i32, %arg1: i32, %arg2: i32) -> (i32, i32, i32, i32) {
    %c0_i32 = arith.constant 0 : i32
    %c0_i32_0 = arith.constant 0 : i32
    return %arg0, %arg1, %arg2, %c0_i32 : i32, i32, i32, i32
  }
}

</mosaic_0001>

<llo_original>
// kernel: tpu_custom_call.1
$region0: #{tpu_custom_call.1}
  #allocation0 [shape = 'u32[]', space=smem, size = 0x4, offset = 0x4, fixed_abs, tag = 'smem constant byte address 0x4 - core index']
  #allocation1 [shape = 'u32[72,128]{1,0:T(1,128)}', space=vmem, size = 0x9000, scoped, tag = 'internal scratch']
  %s0 = inlined_call_operand.vmem [shape: f32[1,3,1,1], index: 0, kind: input, shape index: {}]
  %s1 = inlined_call_operand.vmem [shape: f32[1,3,1,1], index: 1, kind: input, shape index: {}]
  %s2 = inlined_call_operand.hbm [shape: f32[2,3,2,128], index: 2, kind: input, shape index: {}]
  %s3 = inlined_call_operand.hbm [shape: f32[2,3,2,128], index: 3, kind: output, shape index: {}]
  %s4 = sld [smem:[#allocation0]]
  $region49: #{tpu_custom_call.1} parent=0
    _
  %s6 = ssub.s32 1, %s4
  %s7 = scalar_select 0, %s6, %s4
  $region1: #{tpu_custom_call.1} parent=0
    #allocation2 [shape = 'u8[6144]{0}', space=vmem, size = 0x1800, scoped, tag = 'input window, operand 2']
    #allocation3 [shape = 's32[2]{0}', space=sflag, size = 0x8, scoped, tag = 'scoped memory for tpu_custom_call.1']
    #allocation4 [shape = 's32[2]{0}', space=sflag, size = 0x8, scoped, tag = 'scoped memory for tpu_custom_call.1']
    #allocation5 [shape = 'u8[6144]{0}', space=vmem, size = 0x1800, scoped, tag = 'output window, operand 0']
    %8 = vsyncpa [#allocation3], 0
    %s9 = scalar_lea.sflag [#allocation3], 1
    %10 = vsyncpa %s9, 0
    %11 = vsyncpa [#allocation4], 0
    %s12 = scalar_lea.sflag [#allocation4], 1
    %13 = vsyncpa %s12, 0
    loop: start=0, step=1, limit=4
    $region2: #{tpu_custom_call.1} parent=1 // loop_pre_header
      _
    $region3: #{tpu_custom_call.1} parent=1 // loop_header
      %s15 = sphi 0, %s19
      %p16 = scmp.ge.s32.totalorder %s15, 4
      %s22 = sphi 0, %s41
      %s23 = sphi 0, %s37
      %s24 = sphi 0, %s33
      %s25 = sphi 0, %s22
      %s26 = sphi 0, %s23
      %s27 = sphi 0, %s24
      %s28 = sphi 0, %s25
      %s29 = sphi 0, %s26
      %s30 = sphi 0, %s27
      %s44 = sphi 0, %s46
      %s47 = sphi 0, %s44
      %s48 = sphi 0, %s47
      %s64 = sphi 0, %s48
      %s70 = sphi 0, %s72
      %s73 = sphi 0, %s70
      %s74 = sphi 0, %s73
      %s90 = sphi 0, %s74
      %s100 = sphi 0, %s102
      %s103 = sphi 0, %s100
      %s104 = sphi 0, %s103
      %s120 = sphi 0, %s104
      %s130 = sphi 0, %s132
      %s133 = sphi 0, %s130
      %s134 = sphi 0, %s133
      %s150 = sphi 0, %s134
    $region4: #{tpu_custom_call.1} parent=1 // loop_header_branch
      %18 = sbr.rel (%p16) target = $region8
    $region5: #{tpu_custom_call.1} parent=1 // loop_body
      %s20 = ssub.s32 %s15, 1
      %s21 = ssub.s32 %s15, 2
      %s31 = sadd.s32 1, %s24
      %p32 = scmp.ge.s32.totalorder %s31, 1
      %s33 = scalar_select %p32, 0, %s31
      %s34 = sadd.s32 1, %s23
      %s35 = scalar_select %p32, %s34, %s23
      %p36 = scmp.ge.s32.totalorder %s35, 1
      %s37 = scalar_select %p36, 0, %s35
      %s38 = sadd.s32 1, %s22
      %s39 = scalar_select %p36, %s38, %s22
      %p40 = scmp.ge.s32.totalorder %s39, 2
      %s41 = scalar_select %p40, 0, %s39
      %s42 = ssub.s32 %s23, %s37
      %p43 = scmp.eq.s32.totalorder %s42, 0
      %s45 = sadd.s32 %s44, 1
      %s46 = scalar_select %p43, %s44, %s45
      %p49 = pneg %p43
      %p50 = scmp.eq.s32.totalorder %s15, 1
      %p51 = por %p49, %p50
      %p52 = scmp.ne.s32.totalorder %s44, %s47
      %p53 = scmp.eq.s32.totalorder %s15, 0
      %p54 = por %p52, %p53
      %p55 = scmp.ne.s32.totalorder %s44, %s47
      %p56 = scmp.eq.s32.totalorder %s20, 1
      %p57 = por %p55, %p56
      %p58 = scmp.ne.s32.totalorder %s47, %s48
      %p59 = scmp.eq.s32.totalorder %s20, 0
      %p60 = por %p58, %p59
      %p61 = scmp.ne.s32.totalorder %s47, %s48
      %p62 = scmp.eq.s32.totalorder %s21, 1
      %p63 = por %p61, %p62
      %p65 = scmp.ne.s32.totalorder %s48, %s64
      %p66 = scmp.eq.s32.totalorder %s21, 0
      %p67 = por %p65, %p66
      %s68 = ssub.s32 %s23, %s37
      %p69 = scmp.eq.s32.totalorder %s68, 0
      %s71 = sadd.s32 %s70, 1
      %s72 = scalar_select %p69, %s70, %s71
      %p75 = pneg %p69
      %p76 = scmp.eq.s32.totalorder %s15, 1
      %p77 = por %p75, %p76
      %p78 = scmp.ne.s32.totalorder %s70, %s73
      %p79 = scmp.eq.s32.totalorder %s15, 0
      %p80 = por %p78, %p79
      %p81 = scmp.ne.s32.totalorder %s70, %s73
      %p82 = scmp.eq.s32.totalorder %s20, 1
      %p83 = por %p81, %p82
      %p84 = scmp.ne.s32.totalorder %s73, %s74
      %p85 = scmp.eq.s32.totalorder %s20, 0
      %p86 = por %p84, %p85
      %p87 = scmp.ne.s32.totalorder %s73, %s74
      %p88 = scmp.eq.s32.totalorder %s21, 1
      %p89 = por %p87, %p88
      %p91 = scmp.ne.s32.totalorder %s74, %s90
      %p92 = scmp.eq.s32.totalorder %s21, 0
      %p93 = por %p91, %p92
      %s94 = ssub.s32 %s22, %s41
      %s95 = ssub.s32 %s23, %s37
      %s96 = sor.u32 %s94, %s95
      %s97 = ssub.s32 %s24, %s33
      %s98 = sor.u32 %s96, %s97
      %p99 = scmp.eq.s32.totalorder %s98, 0
      %s101 = sadd.s32 %s100, 1
      %s102 = scalar_select %p99, %s100, %s101
      %p105 = pneg %p99
      %p106 = scmp.eq.s32.totalorder %s15, 1
      %p107 = por %p105, %p106
      %p108 = scmp.ne.s32.totalorder %s100, %s103
      %p109 = scmp.eq.s32.totalorder %s15, 0
      %p110 = por %p108, %p109
      %p111 = scmp.ne.s32.totalorder %s100, %s103
      %p112 = scmp.eq.s32.totalorder %s20, 1
      %p113 = por %p111, %p112
      %p114 = scmp.ne.s32.totalorder %s103, %s104
      %p115 = scmp.eq.s32.totalorder %s20, 0
      %p116 = por %p114, %p115
      %p117 = scmp.ne.s32.totalorder %s103, %s104
      %p118 = scmp.eq.s32.totalorder %s21, 1
      %p119 = por %p117, %p118
      %p121 = scmp.ne.s32.totalorder %s104, %s120
      %p122 = scmp.eq.s32.totalorder %s21, 0
      %p123 = por %p121, %p122
      %s124 = ssub.s32 %s22, %s41
      %s125 = ssub.s32 %s23, %s37
      %s126 = sor.u32 %s124, %s125
      %s127 = ssub.s32 %s24, %s33
      %s128 = sor.u32 %s126, %s127
      %p129 = scmp.eq.s32.totalorder %s128, 0
      %s131 = sadd.s32 %s130, 1
      %s132 = scalar_select %p129, %s130, %s131
      %p135 = pneg %p129
      %p136 = scmp.eq.s32.totalorder %s15, 1
      %p137 = por %p135, %p136
      %p138 = scmp.ne.s32.totalorder %s130, %s133
      %p139 = scmp.eq.s32.totalorder %s15, 0
      %p140 = por %p138, %p139
      %p141 = scmp.ne.s32.totalorder %s130, %s133
      %p142 = scmp.eq.s32.totalorder %s20, 1
      %p143 = por %p141, %p142
      %p144 = scmp.ne.s32.totalorder %s133, %s134
      %p145 = scmp.eq.s32.totalorder %s20, 0
      %p146 = por %p144, %p145
      %p147 = scmp.ne.s32.totalorder %s133, %s134
      %p148 = scmp.eq.s32.totalorder %s21, 1
      %p149 = por %p147, %p148
      %p151 = scmp.ne.s32.totalorder %s134, %s150
      %p152 = scmp.eq.s32.totalorder %s21, 0
      %p153 = por %p151, %p152
      %p154 = scmp.le.s32.totalorder 1, %s15
      %p155 = scmp.lt.s32.totalorder %s15, 3
      %p156 = pnand %p154, %p155
      %p157 = pneg %p156
      // Predicated region
      $region9: #{tpu_custom_call.1} parent=5 // pred_check
        _
      $region10: #{tpu_custom_call.1} parent=5 // pred_check_branch
        %159 = sbr.rel (%p156) target = $region12
      $region11: #{tpu_custom_call.1} parent=5 // pred_region
        %s160 = ssub.s32 %s15, 1
        // Predicated region
        $region13: #{tpu_custom_call.1} parent=11 // pred_check
          %p161 = pneg %p60
        $region14: #{tpu_custom_call.1} parent=11 // pred_check_branch
          %163 = sbr.rel (%p161) target = $region16
        $region15: #{tpu_custom_call.1} parent=11 // pred_region
          %s164 = smul.u32 3, %s26
          %p165 = scmp.lt.s32.totalorder %s164, 2
          %s166 = scalar_select %p165, %s164, 2
          %s167 = scalar_lea.vmem %s0, %s166
          %s168 = smul.u32 3, %s26
        $region16: #{tpu_custom_call.1} parent=11 // pred_fallthru
          _
        // Predicated region
        $region17: #{tpu_custom_call.1} parent=11 // pred_check
          %p169 = pneg %p86
        $region18: #{tpu_custom_call.1} parent=11 // pred_check_branch
          %171 = sbr.rel (%p169) target = $region20
        $region19: #{tpu_custom_call.1} parent=11 // pred_region
          %s172 = smul.u32 3, %s26
          %p173 = scmp.lt.s32.totalorder %s172, 2
          %s174 = scalar_select %p173, %s172, 2
          %s175 = scalar_lea.vmem %s1, %s174
          %s176 = smul.u32 3, %s26
        $region20: #{tpu_custom_call.1} parent=11 // pred_fallthru
          _
      $region12: #{tpu_custom_call.1} parent=5 // pred_fallthru
        _
      %p177 = scmp.lt.s32.totalorder %s15, 2
      // Predicated region
      $region21: #{tpu_custom_call.1} parent=5 // pred_check
        %p178 = pneg %p177
      $region22: #{tpu_custom_call.1} parent=5 // pred_check_branch
        %180 = sbr.rel (%p178) target = $region24
      $region23: #{tpu_custom_call.1} parent=5 // pred_region
        // Predicated region
        $region25: #{tpu_custom_call.1} parent=23 // pred_check
          %p181 = pneg %p110
        $region26: #{tpu_custom_call.1} parent=23 // pred_check_branch
          %183 = sbr.rel (%p181) target = $region28
        $region27: #{tpu_custom_call.1} parent=23 // pred_region
          %s184 = sand.u32 %s100, 1
          %s185 = scalar_lea.sflag [#allocation3], %s184
          %s186 = sand.u32 %s100, 1
          %s187 = smul.addr %s186, 6
          %s188 = scalar_lea.vmem [#allocation2], %s187
          %s189 = smul.u32 3, %s23
          %191 = vsyncadd %s185, 0
          %s192 = sadd.s32 %s24, %s189
          %s193 = smul.addr %s22, 3
          %s194 = sadd.s32 %s192, %s193
          %s195 = smul.addr %s194, 2
          %s196 = scalar_lea.hbm %s2, %s195
          %s197 = sshll.u32 %s196, 4
          %s198 = int_to_ptr.hbm [resolvable:$true] %s197
          %s199 = sshll.u32 %s188, 4
          %s200 = int_to_ptr.vmem [resolvable:$true] %s199
          %205 = dma.hbm_to_vmem [thread:$0]  %s198, 96, %s200, %s185, 32, 32, 2
        $region28: #{tpu_custom_call.1} parent=23 // pred_fallthru
          _
      $region24: #{tpu_custom_call.1} parent=5 // pred_fallthru
        _
      %p206 = scmp.le.s32.totalorder 1, %s15
      %p207 = scmp.lt.s32.totalorder %s15, 3
      %p208 = pnand %p206, %p207
      %p209 = pneg %p208
      // Predicated region
      $region29: #{tpu_custom_call.1} parent=5 // pred_check
        _
      $region30: #{tpu_custom_call.1} parent=5 // pred_check_branch
        %211 = sbr.rel (%p208) target = $region32
      $region31: #{tpu_custom_call.1} parent=5 // pred_region
        %s212 = ssub.s32 %s15, 1
        %s213 = sand.u32 %s103, 1
        %s214 = scalar_lea.sflag [#allocation3], %s213
        %s215 = sand.u32 %s103, 1
        %s216 = smul.addr %s215, 6
        %s217 = scalar_lea.vmem [#allocation2], %s216
        // Predicated region
        $region33: #{tpu_custom_call.1} parent=31 // pred_check
          %p218 = pneg %p116
        $region34: #{tpu_custom_call.1} parent=31 // pred_check_branch
          %220 = sbr.rel (%p218) target = $region36
        $region35: #{tpu_custom_call.1} parent=31 // pred_region
          %222 = dma.done %s214, 96
        $region36: #{tpu_custom_call.1} parent=31 // pred_fallthru
          _
        %s223 = smul.u32 3, %s26
        %p224 = scmp.lt.s32.totalorder %s223, 2
        %s225 = scalar_select %p224, %s223, 2
        %s226 = scalar_lea.vmem %s0, %s225
        %p227 = pneg %p60
        %p228 = pneg %p57
        %s229 = smul.u32 3, %s26
        %p230 = scmp.lt.s32.totalorder %s229, 2
        %s231 = scalar_select %p230, %s229, 2
        %s232 = scalar_lea.vmem %s1, %s231
        %p233 = pneg %p86
        %p234 = pneg %p83
        %s235 = sand.u32 %s103, 1
        %s236 = scalar_lea.sflag [#allocation3], %s235
        %s237 = sand.u32 %s103, 1
        %s238 = smul.addr %s237, 6
        %s239 = scalar_lea.vmem [#allocation2], %s238
        %p240 = pneg %p116
        %p241 = pneg %p113
        %p242 = pneg %p146
        %p243 = pneg %p143
        %s244 = sand.u32 %s133, 1
        %s245 = scalar_lea.sflag [#allocation4], %s244
        %s246 = sand.u32 %s133, 1
        %s247 = smul.addr %s246, 6
        %s248 = scalar_lea.vmem [#allocation5], %s247
        %s249 = smul.u32 3, %s26
        %p250 = scmp.lt.s32.totalorder %s249, 2
        %s251 = scalar_select %p250, %s249, 2
        %s252 = scalar_lea.vmem %s0, %s251
        %s253 = smul.u32 3, %s26
        %s254 = smul.u32 3, %s26
        %p255 = scmp.lt.s32.totalorder %s254, 2
        %s256 = scalar_select %p255, %s254, 2
        %s257 = scalar_lea.vmem %s1, %s256
        %s258 = smul.u32 3, %s26
        %s259 = smul.u32 3, %s26
        %s260 = smul.u32 3, %s26
        %v261 = vld [vmem:[%s217] sm:$0x3]
        %v262 = vld [vmem:[%s217 + $0x2] sm:$0x3]
        %v263 = vld [vmem:[%s217 + $0x4] sm:$0x3]
        %v264 = vld [vmem:[%s252] sm:$0x1]
        %v265 = vld [vmem:[%s252 + $0x1] sm:$0x1]
        %v266 = vld [vmem:[%s252 + $0x2] sm:$0x1]
        %v270 = vperm.slane %v264, 0
        %v271 = vperm.slane %v265, 0
        %v272 = vperm.slane %v266, 0
        %273 = vset.pattern.permute.xlu0 0
        %274 = vperm.xlu0 %273, %v270
        %v275 = vpop.permute.xlu0 %274
        %277 = vset.pattern.permute.xlu0 0
        %278 = vperm.xlu0 %277, %v271
        %v279 = vpop.permute.xlu0 %278
        %281 = vset.pattern.permute.xlu0 0
        %282 = vperm.xlu0 %281, %v272
        %v283 = vpop.permute.xlu0 %282
        %v285 = vmul.f32 %v261, %v275
        %v286 = vmul.f32 %v262, %v279
        %v287 = vmul.f32 %v263, %v283
        %v288 = vld [vmem:[%s257] sm:$0x1]
        %v289 = vld [vmem:[%s257 + $0x1] sm:$0x1]
        %v290 = vld [vmem:[%s257 + $0x2] sm:$0x1]
        %v294 = vperm.slane %v288, 0
        %v295 = vperm.slane %v289, 0
        %v296 = vperm.slane %v290, 0
        %297 = vset.pattern.permute.xlu0 0
        %298 = vperm.xlu0 %297, %v294
        %v299 = vpop.permute.xlu0 %298
        %301 = vset.pattern.permute.xlu0 0
        %302 = vperm.xlu0 %301, %v295
        %v303 = vpop.permute.xlu0 %302
        %305 = vset.pattern.permute.xlu0 0
        %306 = vperm.xlu0 %305, %v296
        %v307 = vpop.permute.xlu0 %306
        %v309 = vadd.f32 %v285, %v299
        %v310 = vadd.f32 %v286, %v303
        %v311 = vadd.f32 %v287, %v307
        %312 = vst [vmem:[%s248] sm:$0x3] %v309
        %313 = vst [vmem:[%s248 + $0x2] sm:$0x3] %v310
        %314 = vst [vmem:[%s248 + $0x4] sm:$0x3] %v311
        %s315 = sand.u32 %s133, 1
        %s316 = scalar_lea.sflag [#allocation4], %s315
        %s317 = sand.u32 %s133, 1
        %s318 = smul.addr %s317, 6
        %s319 = scalar_lea.vmem [#allocation5], %s318
        // Predicated region
        $region37: #{tpu_custom_call.1} parent=31 // pred_check
          %p320 = pneg %p143
        $region38: #{tpu_custom_call.1} parent=31 // pred_check_branch
          %322 = sbr.rel (%p320) target = $region40
        $region39: #{tpu_custom_call.1} parent=31 // pred_region
          %s323 = smul.u32 3, %s26
          %325 = vsyncadd %s316, 0
          %s326 = sadd.s32 %s27, %s323
          %s327 = smul.addr %s25, 3
          %s328 = sadd.s32 %s326, %s327
          %s329 = smul.addr %s328, 2
          %s330 = scalar_lea.hbm %s3, %s329
          %s331 = sshll.u32 %s319, 4
          %s332 = int_to_ptr.vmem [resolvable:$true] %s331
          %s333 = sshll.u32 %s330, 4
          %s334 = int_to_ptr.hbm [resolvable:$true] %s333
          %339 = dma.vmem_to_hbm [thread:$0]  %s332, 96, %s334, %s316, 32, 32, 2
        $region40: #{tpu_custom_call.1} parent=31 // pred_fallthru
          _
      $region32: #{tpu_custom_call.1} parent=5 // pred_fallthru
        _
      %p340 = scmp.le.s32.totalorder 2, %s15
      // Predicated region
      $region41: #{tpu_custom_call.1} parent=5 // pred_check
        %p341 = pneg %p340
      $region42: #{tpu_custom_call.1} parent=5 // pred_check_branch
        %343 = sbr.rel (%p341) target = $region44
      $region43: #{tpu_custom_call.1} parent=5 // pred_region
        %s344 = ssub.s32 %s15, 2
        // Predicated region
        $region45: #{tpu_custom_call.1} parent=43 // pred_check
          %p345 = pneg %p149
        $region46: #{tpu_custom_call.1} parent=43 // pred_check_branch
          %347 = sbr.rel (%p345) target = $region48
        $region47: #{tpu_custom_call.1} parent=43 // pred_region
          %s348 = sand.u32 %s134, 1
          %s349 = scalar_lea.sflag [#allocation4], %s348
          %s350 = sand.u32 %s134, 1
          %s351 = smul.addr %s350, 6
          %s352 = scalar_lea.vmem [#allocation5], %s351
          %354 = dma.done %s349, 96
        $region48: #{tpu_custom_call.1} parent=43 // pred_fallthru
          _
      $region44: #{tpu_custom_call.1} parent=5 // pred_fallthru
        _
    $region6: #{tpu_custom_call.1} parent=1 // loop_footer
      %s19 = sadd.s32 1, %s15
    $region7: #{tpu_custom_call.1} parent=1 // loop_footer_branch
      %14 = sbr.rel target = $region3
    $region8: #{tpu_custom_call.1} parent=1 // loop_exit
      _
    %355 = vsyncpa [#allocation3], 1
    %s356 = scalar_lea.sflag [#allocation3], 1
    %357 = vsyncpa %s356, 1
    %358 = vsyncpa [#allocation4], 1
    %s359 = scalar_lea.sflag [#allocation4], 1
    %360 = vsyncpa %s359, 1

</llo_original>
